<compile_context>
chip_gen: v5e
topology: v5e:2x2
jax: 0.10.0
libtpu: 0.0.40
codegen_flags: <defaults>
</compile_context>

<pallas_src>
import jax
import jax.numpy as jnp
from jax.experimental import pallas as pl
from jax.experimental.pallas import tpu as pltpu


def _linear_kernel(x_ref, w_ref, o_ref):
    # x_ref: (TM, d_inp), w_ref: (d_inp, d_model), o_ref: (TM, d_model)
    o_ref[...] = jnp.dot(
        x_ref[...], w_ref[...], preferred_element_type=jnp.float32
    ).astype(o_ref.dtype)


def time_feature_embedding(x: jnp.ndarray, w: jnp.ndarray, *, tm: int = 2048) -> jnp.ndarray:
    """out[..., :] = x[..., :] @ w.T   (nn.Linear(d_inp, d_model, bias=False)).

    x: (..., d_inp), w: (d_model, d_inp) (PyTorch Linear layout).
    Returns (..., d_model) in x.dtype (f32 MXU accumulation inside the kernel).
    """
    d_model, d_inp = w.shape
    lead_shape = x.shape[:-1]

    xf = x.reshape(-1, d_inp)          # (N, d_inp) -- no dtype cast in the wrapper
    wt = w.T                           # (d_inp, d_model), fully VMEM-resident
    n = xf.shape[0]

    # Row tile: multiple of 8 (sublane-legal), capped so tiny inputs use a
    # single grid step. No padding: the last block may be ragged.
    tm_eff = min(tm, max(8, ((n + 7) // 8) * 8))
    grid = (pl.cdiv(n, tm_eff),)

    out_dtype = x.dtype
    itemsize = jnp.dtype(out_dtype).itemsize
    cost = pl.CostEstimate(
        flops=2 * n * d_inp * d_model,
        bytes_accessed=(
            n * d_inp * jnp.dtype(x.dtype).itemsize
            + d_inp * d_model * jnp.dtype(w.dtype).itemsize
            + n * d_model * itemsize
        ),
        transcendentals=0,
    )

    out_flat = pl.pallas_call(
        _linear_kernel,
        out_shape=jax.ShapeDtypeStruct((n, d_model), out_dtype),
        grid_spec=pltpu.PrefetchScalarGridSpec(
            num_scalar_prefetch=0,
            grid=grid,
            in_specs=[
                # (TM, d_inp) block of rows per grid step (ragged last block OK:
                # padded reads are never written back).
                pl.BlockSpec((tm_eff, d_inp), lambda i: (i, 0)),
                # Full weight, same block every step (stays resident in VMEM).
                pl.BlockSpec((d_inp, d_model), lambda i: (0, 0)),
            ],
            out_specs=pl.BlockSpec((tm_eff, d_model), lambda i: (i, 0)),
        ),
        compiler_params=pltpu.CompilerParams(
            dimension_semantics=("parallel",),
        ),
        cost_estimate=cost,
    )(xf, wt)

    return out_flat.reshape(*lead_shape, d_model)


if __name__ == "__main__":
    # Shapes implied by the module: freq='h' -> d_inp=4 time features,
    # d_model=128 (lane-exact), batch=2, seq_len=8.
    freq_map = {"h": 4, "t": 5, "s": 6, "m": 1, "a": 1, "w": 2, "d": 3, "b": 3}
    d_inp = freq_map["h"]
    d_model = 128
    batch, seq_len = 2, 8

    key = jax.random.PRNGKey(0)
    kx, kw, kx2 = jax.random.split(key, 3)
    x = jax.random.normal(kx, (batch, seq_len, d_inp), dtype=jnp.float32)
    # nn.Linear weight layout: (d_model, d_inp)
    w = jax.random.normal(kw, (d_model, d_inp), dtype=jnp.float32) * 0.1

    out = time_feature_embedding(x, w)
    out = jax.block_until_ready(out)
    ref = jnp.einsum("bld,md->blm", x, w)
    assert out.shape == (batch, seq_len, d_model)
    assert out.dtype == jnp.float32
    assert jnp.allclose(out, ref, atol=1e-5, rtol=1e-5)

    # Also exercise the ragged-last-block path (N=15 rows, TM=8 -> 2 steps,
    # last one partial) to validate the no-pad grid.
    x2 = jax.random.normal(kx2, (3, 5, d_inp), dtype=jnp.float32)
    out2 = jax.block_until_ready(time_feature_embedding(x2, w, tm=8))
    ref2 = jnp.einsum("bld,md->blm", x2, w)
    assert out2.shape == (3, 5, d_model)
    assert jnp.allclose(out2, ref2, atol=1e-5, rtol=1e-5)

    print("KERNEL_OK")
</pallas_src>

<mosaic_0001>
module attributes {stable_mosaic.version = 11 : i64} {
  func.func @_linear_kernel(%arg0: i32, %arg1: memref<16x4xf32, #tpu.memory_space<vmem>>, %arg2: memref<4x128xf32, #tpu.memory_space<vmem>>, %arg3: memref<16x128xf32, #tpu.memory_space<vmem>>) attributes {dimension_semantics = [#tpu.dimension_semantics<parallel>], iteration_bounds = array<i64: 1>, scalar_prefetch = 0 : i64, scratch_operands = 0 : i64, tpu.core_type = #tpu.core_type<tc>, window_params = [{transform_indices = @transform_0, window_bounds = array<i64: 16, 4>}, {pipeline_mode = #tpu.pipeline_mode<synchronous>, transform_indices = @transform_1, window_bounds = array<i64: 4, 128>}, {transform_indices = @transform_2, window_bounds = array<i64: 16, 128>}]} {
    %c0 = arith.constant 0 : index
    %c0_0 = arith.constant 0 : index
    %0 = vector.load %arg1[%c0, %c0_0] : memref<16x4xf32, #tpu.memory_space<vmem>>, vector<16x4xf32>
    %c0_1 = arith.constant 0 : index
    %c0_2 = arith.constant 0 : index
    %1 = vector.load %arg2[%c0_1, %c0_2] : memref<4x128xf32, #tpu.memory_space<vmem>>, vector<4x128xf32>
    %cst = arith.constant dense<0.000000e+00> : vector<16x128xf32>
    %2 = tpu.matmul %0, %1, %cst {dimension_numbers = #tpu.dot_dimension_numbers<[1], [0], [0], [1], [0, 0, 1, 1], [], []>} : vector<16x4xf32>, vector<4x128xf32>, vector<16x128xf32> -> vector<16x128xf32>
    %c0_3 = arith.constant 0 : index
    %c0_4 = arith.constant 0 : index
    %3 = vector.load %arg3[%c0_3, %c0_4] : memref<16x128xf32, #tpu.memory_space<vmem>>, vector<16x128xf32>
    tpu.vector_store %arg3[%c0_3, %c0_4], %2 {strides = array<i32>} : memref<16x128xf32, #tpu.memory_space<vmem>>, vector<16x128xf32>,
    return
  }
  func.func @transform_0(%arg0: i32) -> (i32, i32) {
    %c0_i32 = arith.constant 0 : i32
    %c0_i32_0 = arith.constant 0 : i32
    return %arg0, %c0_i32 : i32, i32
  }
  func.func @transform_1(%arg0: i32) -> (i32, i32) {
    %c0_i32 = arith.constant 0 : i32
    %c0_i32_0 = arith.constant 0 : i32
    %c0_i32_1 = arith.constant 0 : i32
    return %c0_i32, %c0_i32_0 : i32, i32
  }
  func.func @transform_2(%arg0: i32) -> (i32, i32) {
    %c0_i32 = arith.constant 0 : i32
    %c0_i32_0 = arith.constant 0 : i32
    return %arg0, %c0_i32 : i32, i32
  }
}

</mosaic_0001>

<llo_original>
// kernel: tpu_custom_call.1
$region0: #{tpu_custom_call.1}
  #allocation0 [shape = 'u32[]', space=smem, size = 0x4, offset = 0x4, fixed_abs, tag = 'smem constant byte address 0x4 - core index']
  #allocation1 [shape = 'u32[72,128]{1,0:T(1,128)}', space=vmem, size = 0x9000, scoped, tag = 'internal scratch']
  %s0 = inlined_call_operand.vmem [shape: f32[16,4], index: 0, kind: input, shape index: {}]
  %s1 = inlined_call_operand.vmem [shape: f32[4,128], index: 1, kind: input, shape index: {}]
  %s2 = inlined_call_operand.hbm [shape: f32[16,128], index: 2, kind: output, shape index: {}]
  %s3 = sld [smem:[#allocation0]]
  $region18: #{tpu_custom_call.1} parent=0
    _
  %s5 = ssub.s32 1, %s3
  %s6 = scalar_select 0, %s5, %s3
  $region1: #{tpu_custom_call.1} parent=0
    #allocation2 [shape = 'u8[8192]{0}', space=vmem, size = 0x2000, scoped, tag = 'output window, operand 0, single buffered']
    #allocation3 [shape = 's32[1]{0}', space=sflag, size = 0x4, scoped, tag = 'scoped memory for tpu_custom_call.1']
    %7 = vsyncpa [#allocation3], 0
    // Predicated region
    $region2: #{tpu_custom_call.1} parent=1 // pred_check
      _
    $region3: #{tpu_custom_call.1} parent=1 // pred_check_branch
      %9 = sbr.rel (0) target = $region5
    $region4: #{tpu_custom_call.1} parent=1 // pred_region
      _
    $region5: #{tpu_custom_call.1} parent=1 // pred_fallthru
      _
    // Predicated region
    $region6: #{tpu_custom_call.1} parent=1 // pred_check
      _
    $region7: #{tpu_custom_call.1} parent=1 // pred_check_branch
      %11 = sbr.rel (0) target = $region9
    $region8: #{tpu_custom_call.1} parent=1 // pred_region
      _
    $region9: #{tpu_custom_call.1} parent=1 // pred_fallthru
      _
    %v12 = vld [vmem:[%s0] sm:$0xff]
    %v13 = vld [vmem:[%s0 + $0x8] sm:$0xff]
    %v14 = vld [vmem:[%s1] sm:$0xf]
    %vm15 = vcmask 31744
    %v17 = vsel %vm15, %v12, 0
    %v20 = vsel %vm15, %v13, 0
    %vm22 = vcmask 1043456
    %v24 = vsel %vm22, %v14, 0
    %26 = vmatpush.msra.mxu0 0.0
    %27 = vmatpush.msra.mxu0 0.0
    %28 = vmatpush.msra.mxu0 0.0
    %29 = vmatpush.msra.mxu0 0.0
    %30 = vmatpush.msra.mxu0 0.0
    %31 = vmatpush.msra.mxu0 0.0
    %32 = vmatpush.msra.mxu0 0.0
    %33 = vmatpush.msra.mxu0 0.0
    %34 = vmatpush.msra.mxu0 0.0
    %35 = vmatpush.msra.mxu0 0.0
    %36 = vmatpush.msra.mxu0 0.0
    %37 = vmatpush.msra.mxu0 0.0
    %38 = vmatpush.msra.mxu0 0.0
    %39 = vmatpush.msra.mxu0 0.0
    %40 = vmatpush.msra.mxu0 0.0
    %41 = vmatpush.msra.mxu0 %v24
    %42 = vmatmul.f32.gmra.mxu0 %v17
    %v43 = vpop.f32.mrf.mxu0
    %v44 = vadd.f32 0.0, %v43
    %45 = vmatmul.f32.gmra.mxu0 %v20
    %v46 = vpop.f32.mrf.mxu0
    %v47 = vadd.f32 0.0, %v46
    %48 = vdwg.mxu0
    %49 = vst [vmem:[#allocation2] sm:$0xff] %v44
    %50 = vst [vmem:[#allocation2 + $0x8] sm:$0xff] %v47
    // Predicated region
    $region10: #{tpu_custom_call.1} parent=1 // pred_check
      _
    $region11: #{tpu_custom_call.1} parent=1 // pred_check_branch
      %52 = sbr.rel (0) target = $region13
    $region12: #{tpu_custom_call.1} parent=1 // pred_region
      %54 = vsyncadd [#allocation3], 0
      %s55 = sshll.u32 [#allocation2], 4
      %s56 = int_to_ptr.vmem [resolvable:$true] %s55
      %s57 = sshll.u32 %s2, 4
      %s58 = int_to_ptr.hbm [resolvable:$true] %s57
      %63 = dma.vmem_to_hbm [thread:$0]  %s56, 256, %s58, [#allocation3], 128, 128, 8
    $region13: #{tpu_custom_call.1} parent=1 // pred_fallthru
      _
    // Predicated region
    $region14: #{tpu_custom_call.1} parent=1 // pred_check
      _
    $region15: #{tpu_custom_call.1} parent=1 // pred_check_branch
      %65 = sbr.rel (0) target = $region17
    $region16: #{tpu_custom_call.1} parent=1 // pred_region
      %67 = dma.done [#allocation3], 256
    $region17: #{tpu_custom_call.1} parent=1 // pred_fallthru
      _
    %68 = vsyncpa [#allocation3], 1

</llo_original>
